<compile_context>
chip_gen: v7x
topology: tpu7x:2x2x1
jax: 0.10.0
libtpu: 0.0.40
codegen_flags: <defaults>
</compile_context>

<pallas_src>
import jax
import jax.numpy as jnp
import numpy as np
from jax.experimental import pallas as pl
from jax.experimental.pallas import tpu as pltpu


def _round_up(x, m):
    return ((x + m - 1) // m) * m


def _cdiv(a, b):
    return (a + b - 1) // b


def _matmul_bias_kernel(x_ref, w_ref, b_ref, o_ref):
    # bf16 x bf16 -> f32 accumulation on the MXU; f32 bias add on the VPU;
    # single bf16 store (lane-dense, unmasked: columns padded to 128-multiple).
    acc = jnp.dot(x_ref[...], w_ref[...], preferred_element_type=jnp.float32)
    o_ref[...] = (acc + b_ref[...]).astype(o_ref.dtype)


def upsample_net_forward(x, v, g, bias, upsample_factor,
                         tm=None, tn=None, out_dtype=jnp.float32):
    """x: (N, C_in, L) float32.  Returns (N, C_out, L * upsample_factor)."""
    uf = upsample_factor
    N, Cin, L = x.shape
    Cout = v.shape[1]
    pad = uf // 2

    K2 = 2 * Cin
    Nout = Cout * uf
    Noutp = _round_up(Nout, 128)          # lane-dense output columns
    M = N * (L + 1)

    # --- weight_norm (glue): w = g * v / ||v||  (norm over dims 1,2, per dim 0)
    # No epsilon, matching torch.nn.utils.weight_norm (all-zero v slice -> NaN).
    norm = jnp.sqrt(jnp.sum(v * v, axis=(1, 2), keepdims=True))
    w = (g * v / norm).astype(jnp.float32)            # (Cin, Cout, 2*uf)
    wA = w[:, :, :uf].reshape(Cin, Nout)              # phase 0 taps (k = 0..uf-1)
    wB = w[:, :, uf:].reshape(Cin, Nout)              # phase 1 taps (k = uf..2uf-1)
    wcat = jnp.concatenate([wA, wB], axis=0)          # (2*Cin, Cout*uf)
    wcat = jnp.pad(wcat, ((0, 0), (0, Noutp - Nout))).astype(jnp.bfloat16)
    bfull = jnp.pad(jnp.repeat(bias, uf), (0, Noutp - Nout))[None, :]  # (1, Noutp) f32

    # --- two-phase LHS (glue):
    #   row (n, m) = [ x[n, :, m] (0 if m == L) , x[n, :, m-1] (0 if m == 0) ]
    # NOTE: for large Cin (~80 mel channels) this concat doubles LHS HBM reads;
    # a shifted-window in-kernel variant (memory_space=pl.ANY + manual copy)
    # would avoid it, but at tiny Cin it is negligible.
    xt = jnp.transpose(x, (0, 2, 1))                  # (N, L, Cin)
    xp = jnp.pad(xt, ((0, 0), (1, 1), (0, 0)))        # (N, L+2, Cin)
    x2 = jnp.concatenate([xp[:, 1:, :], xp[:, :-1, :]], axis=-1)   # (N, L+1, 2Cin)
    x2 = x2.reshape(M, K2).astype(jnp.bfloat16)       # bf16 halves HBM read traffic

    # --- tile sizing -------------------------------------------------------
    MAX_TN = 2048
    if tn is None:
        tn = Noutp if Noutp <= MAX_TN else MAX_TN
    tn = min(_round_up(tn, 128), Noutp)

    # Row tile: target ~2 MiB bf16 output blocks; 16-row multiples (bf16
    # sublane packing); at most the (rounded) number of rows; and >= 2 row
    # blocks when M allows so both v7x TensorCores get work.
    if tm is None:
        tm = max(256, min(4096, (2 * 1024 * 1024) // (tn * 2)))
    tm = _round_up(max(16, tm), 16)
    tm = min(tm, _round_up(M, 16))
    if M > 16 and _cdiv(M, tm) < 2:
        tm = _round_up(_cdiv(M, 2), 16)

    nb_m = _cdiv(M, tm)
    nb_n = _cdiv(Noutp, tn)

    if nb_n == 1:
        # Common case: whole weight slab (K2 x Noutp bf16, a few hundred KB at
        # most) sits resident in VMEM; constant index_map -> fetched once.
        grid = (nb_m,)
        in_specs = [
            pl.BlockSpec((tm, K2), lambda i: (i, 0)),        # LHS row tile
            pl.BlockSpec((K2, Noutp), lambda i: (0, 0)),     # weights (resident)
            pl.BlockSpec((1, Noutp), lambda i: (0, 0)),      # bias (resident)
        ]
        out_specs = pl.BlockSpec((tm, Noutp), lambda i: (i, 0))
        dims = ("parallel",)
    else:
        # Fallback for very wide Cout*uf.
        grid = (nb_m, nb_n)
        in_specs = [
            pl.BlockSpec((tm, K2), lambda i, j: (i, 0)),
            pl.BlockSpec((K2, tn), lambda i, j: (0, j)),
            pl.BlockSpec((1, tn), lambda i, j: (0, j)),
        ]
        out_specs = pl.BlockSpec((tm, tn), lambda i, j: (i, j))
        dims = ("parallel", "parallel")

    # VMEM limit from the actual double-buffered block footprint (+headroom),
    # capped well below v7x's 64 MiB-per-TensorCore physical VMEM.
    block_bytes = (2 * tm * K2 * 2        # LHS double buffer (bf16)
                   + 2 * K2 * tn * 2      # weight buffer (bf16)
                   + 2 * tn * 4           # bias buffer (f32)
                   + 2 * tm * tn * 2)     # output double buffer (bf16)
    vmem_limit = int(min(max(2 * block_bytes + (4 << 20), 16 << 20), 48 << 20))

    cost = pl.CostEstimate(
        flops=2 * M * K2 * Noutp,
        transcendentals=0,
        bytes_accessed=2 * M * K2 + 2 * K2 * Noutp + 4 * Noutp + 2 * M * Noutp,
    )

    y = pl.pallas_call(
        _matmul_bias_kernel,
        out_shape=jax.ShapeDtypeStruct((M, Noutp), jnp.bfloat16),
        grid_spec=pltpu.PrefetchScalarGridSpec(
            num_scalar_prefetch=0,
            grid=grid,
            in_specs=in_specs,
            out_specs=out_specs,
        ),
        compiler_params=pltpu.CompilerParams(
            dimension_semantics=dims,
            vmem_limit_bytes=vmem_limit,
        ),
        cost_estimate=cost,
    )(x2, wcat, bfull)

    # --- reassemble (glue, bf16): y[n*(L+1)+m, co*uf+j] == full[n, co, m*uf+j]
    y = y[:, :Nout].reshape(N, L + 1, Cout, uf)
    y = jnp.transpose(y, (0, 2, 1, 3)).reshape(N, Cout, (L + 1) * uf)
    # ConvTranspose1d padding removal + forward()'s crop to L*uf, then cast to
    # the module's dtype (bf16 callers can pass out_dtype=jnp.bfloat16).
    return y[:, :, pad: pad + L * uf].astype(out_dtype)


def _reference_upsample_net(x, v, g, bias, uf):
    """Pure-numpy reference matching torch ConvTranspose1d + weight_norm + crop."""
    x, v, g, bias = map(np.asarray, (x, v, g, bias))
    norm = np.sqrt((v ** 2).sum(axis=(1, 2), keepdims=True))
    w = g * v / norm
    N, Cin, L = x.shape
    Cout, K = w.shape[1], w.shape[2]
    pad = uf // 2
    Lfull = (L - 1) * uf + K
    full = np.zeros((N, Cout, Lfull), dtype=np.float64)
    for n in range(N):
        for ci in range(Cin):
            for l in range(L):
                for co in range(Cout):
                    for k in range(K):
                        full[n, co, l * uf + k] += x[n, ci, l] * w[ci, co, k]
    out = full[:, :, pad: Lfull - pad] + bias[None, :, None]
    return out[:, :, : L * uf]


if __name__ == "__main__":
    # Module hyper-params (small, consistent with the forward pass)
    input_size = 4        # C_in
    output_size = 8       # C_out
    upsample_factor = 4
    N, L = 2, 16

    key = jax.random.PRNGKey(0)
    kx, kv, kg, kb = jax.random.split(key, 4)

    x = jax.random.normal(kx, (N, input_size, L), dtype=jnp.float32)
    # ConvTranspose1d weight: (in_channels, out_channels, kernel_size)
    v = jax.random.normal(
        kv, (input_size, output_size, upsample_factor * 2), dtype=jnp.float32) * 0.1
    g = jax.random.normal(kg, (input_size, 1, 1), dtype=jnp.float32) * 0.5 + 1.0
    bias = jax.random.normal(kb, (output_size,), dtype=jnp.float32) * 0.1

    fwd = jax.jit(upsample_net_forward, static_argnums=(4,))
    out = fwd(x, v, g, bias, upsample_factor)
    out = jax.block_until_ready(out)

    assert out.shape == (N, output_size, L * upsample_factor), out.shape

    ref = _reference_upsample_net(x, v, g, bias, upsample_factor)
    # bf16 MXU inputs + bf16 kernel output (f32 accumulation) -> ~1e-3..1e-2
    # typical element error at these magnitudes.
    np.testing.assert_allclose(np.asarray(out), ref, rtol=2e-2, atol=2e-2)

    print("KERNEL_OK")
</pallas_src>

<mosaic_0001>
module attributes {stable_mosaic.version = 11 : i64} {
  func.func @_matmul_bias_kernel(%arg0: i32, %arg1: memref<32x8xbf16, #tpu.memory_space<vmem>>, %arg2: memref<8x128xbf16, #tpu.memory_space<vmem>>, %arg3: memref<1x128xf32, #tpu.memory_space<vmem>>, %arg4: memref<32x128xbf16, #tpu.memory_space<vmem>>) attributes {dimension_semantics = [#tpu.dimension_semantics<parallel>], iteration_bounds = array<i64: 2>, scalar_prefetch = 0 : i64, scratch_operands = 0 : i64, tpu.core_type = #tpu.core_type<tc>, window_params = [{transform_indices = @transform_0, window_bounds = array<i64: 32, 8>}, {pipeline_mode = #tpu.pipeline_mode<synchronous>, transform_indices = @transform_1, window_bounds = array<i64: 8, 128>}, {pipeline_mode = #tpu.pipeline_mode<synchronous>, transform_indices = @transform_2, window_bounds = array<i64: 1, 128>}, {transform_indices = @transform_3, window_bounds = array<i64: 32, 128>}]} {
    %c0 = arith.constant 0 : index
    %c0_0 = arith.constant 0 : index
    %0 = vector.load %arg1[%c0, %c0_0] : memref<32x8xbf16, #tpu.memory_space<vmem>>, vector<32x8xbf16>
    %c0_1 = arith.constant 0 : index
    %c0_2 = arith.constant 0 : index
    %1 = vector.load %arg2[%c0_1, %c0_2] : memref<8x128xbf16, #tpu.memory_space<vmem>>, vector<8x128xbf16>
    %cst = arith.constant dense<0.000000e+00> : vector<32x128xf32>
    %2 = tpu.matmul %0, %1, %cst {dimension_numbers = #tpu.dot_dimension_numbers<[1], [0], [0], [1], [0, 0, 1, 1], [], []>} : vector<32x8xbf16>, vector<8x128xbf16>, vector<32x128xf32> -> vector<32x128xf32>
    %c0_3 = arith.constant 0 : index
    %c0_4 = arith.constant 0 : index
    %3 = vector.load %arg3[%c0_3, %c0_4] : memref<1x128xf32, #tpu.memory_space<vmem>>, vector<1x128xf32>
    %4 = vector.broadcast %3 : vector<1x128xf32> to vector<32x128xf32>
    %5 = arith.addf %2, %4 : vector<32x128xf32>
    %6 = arith.truncf %5 : vector<32x128xf32> to vector<32x128xbf16>
    %c0_5 = arith.constant 0 : index
    %c0_6 = arith.constant 0 : index
    %7 = vector.load %arg4[%c0_5, %c0_6] : memref<32x128xbf16, #tpu.memory_space<vmem>>, vector<32x128xbf16>
    tpu.vector_store %arg4[%c0_5, %c0_6], %6 {strides = array<i32>} : memref<32x128xbf16, #tpu.memory_space<vmem>>, vector<32x128xbf16>,
    return
  }
  func.func @transform_0(%arg0: i32) -> (i32, i32) {
    %c0_i32 = arith.constant 0 : i32
    %c0_i32_0 = arith.constant 0 : i32
    return %arg0, %c0_i32 : i32, i32
  }
  func.func @transform_1(%arg0: i32) -> (i32, i32) {
    %c0_i32 = arith.constant 0 : i32
    %c0_i32_0 = arith.constant 0 : i32
    %c0_i32_1 = arith.constant 0 : i32
    return %c0_i32, %c0_i32_0 : i32, i32
  }
  func.func @transform_2(%arg0: i32) -> (i32, i32) {
    %c0_i32 = arith.constant 0 : i32
    %c0_i32_0 = arith.constant 0 : i32
    %c0_i32_1 = arith.constant 0 : i32
    return %c0_i32, %c0_i32_0 : i32, i32
  }
  func.func @transform_3(%arg0: i32) -> (i32, i32) {
    %c0_i32 = arith.constant 0 : i32
    %c0_i32_0 = arith.constant 0 : i32
    return %arg0, %c0_i32 : i32, i32
  }
}

</mosaic_0001>

<llo_original>
// kernel: upsample_net_forward.1
$region0: #{upsample_net_forward.1}
  #allocation0 [shape = 'u32[]', space=smem, size = 0x4, offset = 0x4, fixed_abs, tag = 'smem constant byte address 0x4 - core index']
  #allocation1 [shape = 'u32[144,128]{1,0:T(1,128)}', space=vmem, size = 0x12000, scoped, tag = 'internal scratch']
  %s0 = inlined_call_operand.vmem [shape: bf16[34,8], index: 0, kind: input, shape index: {}]
  %s1 = inlined_call_operand.vmem [shape: bf16[8,128], index: 1, kind: input, shape index: {}]
  %s2 = inlined_call_operand.vmem [shape: f32[1,128], index: 2, kind: input, shape index: {}]
  %s3 = inlined_call_operand.vmem [shape: bf16[34,128], index: 3, kind: output, shape index: {}]
  %s4 = sld [smem:[#allocation0]]
  $region89: #{upsample_net_forward.1} parent=0
    _
  %s6 = ssub.s32 1, %s4
  %s7 = scalar_select 0, %s6, %s4
  $region1: #{upsample_net_forward.1} parent=0
    #allocation2 [shape = 'u8[16384]{0}', space=vmem, size = 0x4000, scoped, tag = 'output window, operand 0']
    loop: start=0, step=1, limit=4
    $region2: #{upsample_net_forward.1} parent=1 // loop_pre_header
      _
    $region3: #{upsample_net_forward.1} parent=1 // loop_header
      %s9 = sphi 0, %s13
      %p10 = scmp.ge.s32.totalorder %s9, 4
      %s19 = sphi 0, %s21
      %s22 = sphi 0, %s19
      %s23 = sphi 0, %s22
      %s39 = sphi 0, %s23
      %s43 = sphi 0, %s43
      %s45 = sphi 0, %s43
      %s46 = sphi 0, %s45
      %s60 = sphi 0, %s46
      %s64 = sphi 0, %s64
      %s66 = sphi 0, %s64
      %s67 = sphi 0, %s66
      %s81 = sphi 0, %s67
      %s87 = sphi 0, %s89
      %s90 = sphi 0, %s87
      %s91 = sphi 0, %s90
      %s107 = sphi 0, %s91
    $region4: #{upsample_net_forward.1} parent=1 // loop_header_branch
      %12 = sbr.rel (%p10) target = $region8
    $region5: #{upsample_net_forward.1} parent=1 // loop_body
      %s14 = ssub.s32 %s9, 1
      %s15 = ssub.s32 %s9, 2
      %s16 = sadd.s32 %s9, 1
      %s17 = ssub.s32 %s9, %s16
      %p18 = scmp.eq.s32.totalorder %s17, 0
      %s20 = sadd.s32 %s19, 1
      %s21 = scalar_select %p18, %s19, %s20
      %p24 = pneg %p18
      %p25 = scmp.eq.s32.totalorder %s9, 1
      %p26 = por %p24, %p25
      %p27 = scmp.ne.s32.totalorder %s19, %s22
      %p28 = scmp.eq.s32.totalorder %s9, 0
      %p29 = por %p27, %p28
      %p30 = scmp.ne.s32.totalorder %s19, %s22
      %p31 = scmp.eq.s32.totalorder %s14, 1
      %p32 = por %p30, %p31
      %p33 = scmp.ne.s32.totalorder %s22, %s23
      %p34 = scmp.eq.s32.totalorder %s14, 0
      %p35 = por %p33, %p34
      %p36 = scmp.ne.s32.totalorder %s22, %s23
      %p37 = scmp.eq.s32.totalorder %s15, 1
      %p38 = por %p36, %p37
      %p40 = scmp.ne.s32.totalorder %s23, %s39
      %p41 = scmp.eq.s32.totalorder %s15, 0
      %p42 = por %p40, %p41
      %s44 = sadd.s32 %s43, 1
      %p47 = scmp.eq.s32.totalorder %s9, 1
      %p48 = scmp.ne.s32.totalorder %s43, %s45
      %p49 = scmp.eq.s32.totalorder %s9, 0
      %p50 = por %p48, %p49
      %p51 = scmp.ne.s32.totalorder %s43, %s45
      %p52 = scmp.eq.s32.totalorder %s14, 1
      %p53 = por %p51, %p52
      %p54 = scmp.ne.s32.totalorder %s45, %s46
      %p55 = scmp.eq.s32.totalorder %s14, 0
      %p56 = por %p54, %p55
      %p57 = scmp.ne.s32.totalorder %s45, %s46
      %p58 = scmp.eq.s32.totalorder %s15, 1
      %p59 = por %p57, %p58
      %p61 = scmp.ne.s32.totalorder %s46, %s60
      %p62 = scmp.eq.s32.totalorder %s15, 0
      %p63 = por %p61, %p62
      %s65 = sadd.s32 %s64, 1
      %p68 = scmp.eq.s32.totalorder %s9, 1
      %p69 = scmp.ne.s32.totalorder %s64, %s66
      %p70 = scmp.eq.s32.totalorder %s9, 0
      %p71 = por %p69, %p70
      %p72 = scmp.ne.s32.totalorder %s64, %s66
      %p73 = scmp.eq.s32.totalorder %s14, 1
      %p74 = por %p72, %p73
      %p75 = scmp.ne.s32.totalorder %s66, %s67
      %p76 = scmp.eq.s32.totalorder %s14, 0
      %p77 = por %p75, %p76
      %p78 = scmp.ne.s32.totalorder %s66, %s67
      %p79 = scmp.eq.s32.totalorder %s15, 1
      %p80 = por %p78, %p79
      %p82 = scmp.ne.s32.totalorder %s67, %s81
      %p83 = scmp.eq.s32.totalorder %s15, 0
      %p84 = por %p82, %p83
      %s85 = ssub.s32 %s9, %s16
      %p86 = scmp.eq.s32.totalorder %s85, 0
      %s88 = sadd.s32 %s87, 1
      %s89 = scalar_select %p86, %s87, %s88
      %p92 = pneg %p86
      %p93 = scmp.eq.s32.totalorder %s9, 1
      %p94 = por %p92, %p93
      %p95 = scmp.ne.s32.totalorder %s87, %s90
      %p96 = scmp.eq.s32.totalorder %s9, 0
      %p97 = por %p95, %p96
      %p98 = scmp.ne.s32.totalorder %s87, %s90
      %p99 = scmp.eq.s32.totalorder %s14, 1
      %p100 = por %p98, %p99
      %p101 = scmp.ne.s32.totalorder %s90, %s91
      %p102 = scmp.eq.s32.totalorder %s14, 0
      %p103 = por %p101, %p102
      %p104 = scmp.ne.s32.totalorder %s90, %s91
      %p105 = scmp.eq.s32.totalorder %s15, 1
      %p106 = por %p104, %p105
      %p108 = scmp.ne.s32.totalorder %s91, %s107
      %p109 = scmp.eq.s32.totalorder %s15, 0
      %p110 = por %p108, %p109
      %p111 = scmp.le.s32.totalorder 1, %s9
      %p112 = scmp.lt.s32.totalorder %s9, 3
      %p113 = pnand %p111, %p112
      %p114 = pneg %p113
      // Predicated region
      $region9: #{upsample_net_forward.1} parent=5 // pred_check
        _
      $region10: #{upsample_net_forward.1} parent=5 // pred_check_branch
        %116 = sbr.rel (%p113) target = $region12
      $region11: #{upsample_net_forward.1} parent=5 // pred_region
        %s117 = ssub.s32 %s9, 1
        // Predicated region
        $region13: #{upsample_net_forward.1} parent=11 // pred_check
          %p118 = pneg %p56
        $region14: #{upsample_net_forward.1} parent=11 // pred_check_branch
          %120 = sbr.rel (%p118) target = $region16
        $region15: #{upsample_net_forward.1} parent=11 // pred_region
          _
        $region16: #{upsample_net_forward.1} parent=11 // pred_fallthru
          _
        // Predicated region
        $region17: #{upsample_net_forward.1} parent=11 // pred_check
          %p121 = pneg %p77
        $region18: #{upsample_net_forward.1} parent=11 // pred_check_branch
          %123 = sbr.rel (%p121) target = $region20
        $region19: #{upsample_net_forward.1} parent=11 // pred_region
          _
        $region20: #{upsample_net_forward.1} parent=11 // pred_fallthru
          _
      $region12: #{upsample_net_forward.1} parent=5 // pred_fallthru
        _
      %p124 = scmp.lt.s32.totalorder %s9, 2
      // Predicated region
      $region21: #{upsample_net_forward.1} parent=5 // pred_check
        %p125 = pneg %p124
      $region22: #{upsample_net_forward.1} parent=5 // pred_check_branch
        %127 = sbr.rel (%p125) target = $region24
      $region23: #{upsample_net_forward.1} parent=5 // pred_region
        // Predicated region
        $region25: #{upsample_net_forward.1} parent=23 // pred_check
          %p128 = pneg %p29
        $region26: #{upsample_net_forward.1} parent=23 // pred_check_branch
          %130 = sbr.rel (%p128) target = $region28
        $region27: #{upsample_net_forward.1} parent=23 // pred_region
          %s131 = smul.u32 4, %s9
          %s132 = ssub.s32 5, %s131
          %p133 = scmp.lt.s32.totalorder %s132, 4
          %s134 = scalar_select %p133, %s132, 4
          %s135 = smul.u32 64, %s134
          %p136 = scmp.lt.s32.totalorder %s131, 4
          %s137 = scalar_select %p136, %s131, 4
          %s138 = smul.addr %s137, 4
          %s139 = scalar_lea.vmem %s0, %s138
          %s140 = smul.u32 4, %s9
          %s141 = ssub.s32 5, %s140
          %p142 = scmp.lt.s32.totalorder %s141, 4
          %s143 = scalar_select %p142, %s141, 4
          %s144 = smul.u32 64, %s143
        $region28: #{upsample_net_forward.1} parent=23 // pred_fallthru
          _
      $region24: #{upsample_net_forward.1} parent=5 // pred_fallthru
        _
      %p145 = scmp.le.s32.totalorder 1, %s9
      %p146 = scmp.lt.s32.totalorder %s9, 3
      %p147 = pnand %p145, %p146
      %p148 = pneg %p147
      // Predicated region
      $region29: #{upsample_net_forward.1} parent=5 // pred_check
        _
      $region30: #{upsample_net_forward.1} parent=5 // pred_check_branch
        %150 = sbr.rel (%p147) target = $region32
      $region31: #{upsample_net_forward.1} parent=5 // pred_region
        %s151 = ssub.s32 %s9, 1
        %s152 = smul.u32 4, %s14
        %s153 = ssub.s32 5, %s152
        %p154 = scmp.lt.s32.totalorder %s153, 4
        %s155 = scalar_select %p154, %s153, 4
        %s156 = smul.u32 64, %s155
        %p157 = scmp.lt.s32.totalorder %s152, 4
        %s158 = scalar_select %p157, %s152, 4
        %s159 = smul.addr %s158, 4
        %s160 = scalar_lea.vmem %s0, %s159
        %p161 = pneg %p35
        %p162 = pneg %p32
        %p163 = pneg %p56
        %p164 = pneg %p53
        %p165 = pneg %p77
        %p166 = pneg %p74
        %p167 = pneg %p103
        %p168 = pneg %p100
        %s169 = sand.u32 %s90, 1
        %s170 = sand.u32 %s90, 1
        %s171 = smul.addr %s170, 16
        %s172 = scalar_lea.vmem [#allocation2], %s171
        %s173 = smul.u32 4, %s14
        %s174 = ssub.s32 5, %s173
        %p175 = scmp.lt.s32.totalorder %s174, 4
        %s176 = scalar_select %p175, %s174, 4
        %s177 = smul.u32 64, %s176
        %p178 = scmp.lt.s32.totalorder %s173, 4
        %s179 = scalar_select %p178, %s173, 4
        %s180 = smul.addr %s179, 4
        %s181 = scalar_lea.vmem %s0, %s180
        %s182 = smul.u32 4, %s14
        %s183 = ssub.s32 5, %s182
        %p184 = scmp.lt.s32.totalorder %s183, 4
        %s185 = scalar_select %p184, %s183, 4
        %s186 = smul.u32 64, %s185
        %s187 = smul.u32 4, %s14
        %s188 = ssub.s32 5, %s187
        %p189 = scmp.lt.s32.totalorder %s188, 4
        %s190 = scalar_select %p189, %s188, 4
        %s191 = smul.u32 64, %s190
        %v193 = vld [vmem:[%s181] sm:$0xf]
        %v194 = vld [vmem:[%s181 + $0x4] sm:$0xf]
        %v195 = vld [vmem:[%s181 + $0x8] sm:$0xf]
        %v196 = vld [vmem:[%s181 + $0xc] sm:$0xf]
        %v197 = vld [vmem:[%s1] sm:$0xf]
        %v198 = vld [vmem:[%s2] sm:$0x1]
        %v200 = vlaneseq
        %v201 = vshrl.u32 %v200, 7
        %v202 = vsub.s32 0, %v201
        %v203 = vrot.slane %v198, %v202
        %v209 = vunpack.c.l.b16 %v193
        %v210 = vunpack.c.l.b16 %v194
        %v211 = vunpack.c.l.b16 %v195
        %v212 = vunpack.c.l.b16 %v196
        %v213 = vpack.c.b16 %v210, %v209
        %v214 = vpack.c.b16 %v212, %v211
        %vm215 = vcmask 64512
        %v217 = vsel %vm215, %v213, 0
        %v220 = vsel %vm215, %v214, 0
        %vm222 = vcmask 1043456
        %v224 = vsel %vm222, %v197, 0
        %226 = vmatprep.subr.bf16.mxu0 0
        %227 = vmatpush1.bf16.msra.mxu0 %v224
        %228 = vmatprep.subr.bf16.mxu0 0
        %229 = vmatpush1.bf16.msra.mxu0 0
        %230 = vmatprep.subr.bf16.mxu0 0
        %231 = vmatpush1.bf16.msra.mxu0 0
        %232 = vmatprep.subr.bf16.mxu0 0
        %233 = vmatpush1.bf16.msra.mxu0 0
        %234 = vmatprep.subr.bf16.mxu0 0
        %235 = vmatpush1.bf16.msra.mxu0 0
        %236 = vmatprep.subr.bf16.mxu0 0
        %237 = vmatpush1.bf16.msra.mxu0 0
        %238 = vmatprep.subr.bf16.mxu0 0
        %239 = vmatpush1.bf16.msra.mxu0 0
        %240 = vmatprep.subr.bf16.mxu0 0
        %241 = vmatpush1.bf16.msra.mxu0 0
        %242 = vmatprep.subr.bf16.mxu0 0
        %243 = vmatpush1.bf16.msra.mxu0 0
        %244 = vmatprep.subr.bf16.mxu0 0
        %245 = vmatpush1.bf16.msra.mxu0 0
        %246 = vmatprep.subr.bf16.mxu0 0
        %247 = vmatpush1.bf16.msra.mxu0 0
        %248 = vmatprep.subr.bf16.mxu0 0
        %249 = vmatpush1.bf16.msra.mxu0 0
        %250 = vmatprep.subr.bf16.mxu0 0
        %251 = vmatpush1.bf16.msra.mxu0 0
        %252 = vmatprep.subr.bf16.mxu0 0
        %253 = vmatpush1.bf16.msra.mxu0 0
        %254 = vmatprep.subr.bf16.mxu0 0
        %255 = vmatpush1.bf16.msra.mxu0 0
        %256 = vmatprep.subr.bf16.mxu0 0
        %257 = vmatpush1.bf16.msra.mxu0 0
        %258 = vmatprep.mubr.bf16.mxu0 0
        %259 = vmatmul.mubr.bf16.gmra.mrb[0].mxu0 %v217
        %v260 = vpop.f32.mrb[0].mxu0
        %v261 = vadd.f32 %v203, %v260
        %v262 = vpop.f32.mrb[0].mxu0
        %v263 = vpop.f32.mrb[0].mxu0
        %v264 = vadd.f32 %v203, %v263
        %v265 = vpop.f32.mrb[0].mxu0
        %266 = vmatprep.mubr.bf16.mxu0 0
        %267 = vmatmul.mubr.bf16.gmra.mrb[0].mxu0 %v220
        %v268 = vpop.f32.mrb[0].mxu0
        %v269 = vadd.f32 %v203, %v268
        %v270 = vpop.f32.mrb[0].mxu0
        %v271 = vpop.f32.mrb[0].mxu0
        %v272 = vadd.f32 %v203, %v271
        %v273 = vpop.f32.mrb[0].mxu0
        %274 = vdwg.mxu0
        %v275 = vpack.c.bf16 %v264, %v261
        %v276 = vpack.c.bf16 %v272, %v269
        %v279 = vunpack.c.l.b16 %v275
        %v280 = vunpack.c.h.b16 %v275
        %v281 = vunpack.c.l.b16 %v276
        %v282 = vunpack.c.h.b16 %v276
        %v283 = vpack.c.b16 %v279, %v279
        %v284 = vpack.c.b16 %v280, %v280
        %v285 = vpack.c.b16 %v281, %v281
        %v286 = vpack.c.b16 %v282, %v282
        %291 = vst [vmem:[%s172] sm:$0xf] %v283
        %292 = vst [vmem:[%s172 + $0x4] sm:$0xf] %v284
        %293 = vst [vmem:[%s172 + $0x8] sm:$0xf] %v285
        %294 = vst [vmem:[%s172 + $0xc] sm:$0xf] %v286
        %s295 = sand.u32 %s90, 1
        %s296 = sand.u32 %s90, 1
        %s297 = smul.addr %s296, 16
        %s298 = scalar_lea.vmem [#allocation2], %s297
        // Predicated region
        $region33: #{upsample_net_forward.1} parent=31 // pred_check
          %p299 = pneg %p100
        $region34: #{upsample_net_forward.1} parent=31 // pred_check_branch
          %301 = sbr.rel (%p299) target = $region36
        $region35: #{upsample_net_forward.1} parent=31 // pred_region
          %s302 = smul.u32 4, %s14
          %s303 = ssub.s32 5, %s302
          %p304 = scmp.lt.s32.totalorder %s303, 4
          %s305 = scalar_select %p304, %s303, 4
          %s306 = smul.u32 64, %s305
          %p307 = scmp.ne.s32.totalorder 0, %s306
          %s308 = smul.addr %s302, 4
          %s309 = scalar_lea.vmem %s3, %s308
          // Predicated region
          $region37: #{upsample_net_forward.1} parent=35 // pred_check
            %p310 = pneg %p307
          $region38: #{upsample_net_forward.1} parent=35 // pred_check_branch
            %312 = sbr.rel (%p310) target = $region40
          $region39: #{upsample_net_forward.1} parent=35 // pred_region
            // Predicated region
            $region41: #{upsample_net_forward.1} parent=39 // pred_check
              _
            $region42: #{upsample_net_forward.1} parent=39 // pred_check_branch
              %314 = sbr.rel target = $region44
            $region43: #{upsample_net_forward.1} parent=39 // pred_region
              // Predicated region
              $region63: #{upsample_net_forward.1} parent=43 // pred_check
                _
              $region64: #{upsample_net_forward.1} parent=43 // pred_check_branch
                %369 = sbr.rel (0) target = $region66
              $region65: #{upsample_net_forward.1} parent=43 // pred_region
                %s371 = sshrl.u32 %s305, 2
                // While loop
                $region67: #{upsample_net_forward.1} parent=65 // loop_pre_header
                  _
                $region68: #{upsample_net_forward.1} parent=65 // loop_header
                  %s373 = sphi 0, %s375
                  %p374 = scmp.ge.s32.totalorder %s373, %s371
                  %s378 = sphi 0, %s391
                  %s379 = sphi %s298, %s394
                  %s380 = sphi %s309, %s395
                $region69: #{upsample_net_forward.1} parent=65 // loop_header_branch
                  %377 = sbr.rel (%p374) target = $region73
                $region70: #{upsample_net_forward.1} parent=65 // loop_body
                  %v381 = vld [vmem:[%s379] sm:$0xf]
                  %382 = vst [vmem:[%s380] sm:$0xf] %v381
                  %v383 = vld [vmem:[%s379 + $0x4] sm:$0xf]
                  %384 = vst [vmem:[%s380 + $0x4] sm:$0xf] %v383
                  %v385 = vld [vmem:[%s379 + $0x8] sm:$0xf]
                  %386 = vst [vmem:[%s380 + $0x8] sm:$0xf] %v385
                  %v387 = vld [vmem:[%s379 + $0xc] sm:$0xf]
                  %388 = vst [vmem:[%s380 + $0xc] sm:$0xf] %v387
                  %s389 = sadd.s32 1, %s378
                  %p390 = scmp.ge.s32.totalorder %s389, %s371
                  %s391 = scalar_select %p390, 0, %s389
                  %s392 = smul.u32 %s391, 16
                  %s393 = smul.u32 %s391, 16
                  %s394 = scalar_lea.vmem %s298, %s392 [#allocation2]
                  %s395 = scalar_lea.vmem %s309, %s393
                $region71: #{upsample_net_forward.1} parent=65 // loop_footer
                  %s375 = sadd.s32 %s373, 1
                $region72: #{upsample_net_forward.1} parent=65 // loop_footer_branch
                  %372 = sbr.rel target = $region68
                $region73: #{upsample_net_forward.1} parent=65 // loop_exit
                  _
                %s396 = sshrl.u32 %s305, 2
                %s397 = sand.u32 %s305, 3
                %s398 = smul.u32 %s396, 4
                %s399 = smul.u32 4, %s398
                %s400 = scalar_lea.vmem %s298, %s399 [#allocation2]
                %s401 = smul.u32 4, %s398
                %s402 = scalar_lea.vmem %s309, %s401
                // While loop
                $region74: #{upsample_net_forward.1} parent=65 // loop_pre_header
                  _
                $region75: #{upsample_net_forward.1} parent=65 // loop_header
                  %s404 = sphi 0, %s406
                  %p405 = scmp.ge.s32.totalorder %s404, %s397
                  %s409 = sphi 0, %s416
                  %s410 = sphi %s400, %s419
                  %s411 = sphi %s402, %s420
                $region76: #{upsample_net_forward.1} parent=65 // loop_header_branch
                  %408 = sbr.rel (%p405) target = $region80
                $region77: #{upsample_net_forward.1} parent=65 // loop_body
                  %v412 = vld [vmem:[%s410] sm:$0xf]
                  %413 = vst [vmem:[%s411] sm:$0xf] %v412
                  %s414 = sadd.s32 1, %s409
                  %p415 = scmp.ge.s32.totalorder %s414, %s397
                  %s416 = scalar_select %p415, 0, %s414
                  %s417 = smul.u32 %s416, 4
                  %s418 = smul.u32 %s416, 4
                  %s419 = scalar_lea.vmem %s400, %s417 [#allocation2]
                  %s420 = scalar_lea.vmem %s402, %s418
                $region78: #{upsample_net_forward.1} parent=65 // loop_footer
                  %s406 = sadd.s32 %s404, 1
                $region79: #{upsample_net_forward.1} parent=65 // loop_footer_branch
                  %403 = sbr.rel target = $region75
                $region80: #{upsample_net_forward.1} parent=65 // loop_exit
                  _
              $region66: #{upsample_net_forward.1} parent=43 // pred_fallthru
                _
            $region44: #{upsample_net_forward.1} parent=39 // pred_fallthru
              _
            // Predicated region
            $region45: #{upsample_net_forward.1} parent=39 // pred_check
              _
            $region46: #{upsample_net_forward.1} parent=39 // pred_check_branch
              %316 = sbr.rel (0) target = $region48
            $region47: #{upsample_net_forward.1} parent=39 // pred_region
              %s318 = sshrl.u32 %s305, 2
              // While loop
              $region49: #{upsample_net_forward.1} parent=47 // loop_pre_header
                _
              $region50: #{upsample_net_forward.1} parent=47 // loop_header
                %s320 = sphi 0, %s322
                %p321 = scmp.ge.s32.totalorder %s320, %s318
                %s325 = sphi 0, %s338
                %s326 = sphi %s298, %s341
                %s327 = sphi %s309, %s342
              $region51: #{upsample_net_forward.1} parent=47 // loop_header_branch
                %324 = sbr.rel (%p321) target = $region55
              $region52: #{upsample_net_forward.1} parent=47 // loop_body
                %v328 = vld [vmem:[%s326] sm:$0xf]
                %329 = vst [vmem:[%s327] sm:$0xf] %v328
                %v330 = vld [vmem:[%s326 + $0x4] sm:$0xf]
                %331 = vst [vmem:[%s327 + $0x4] sm:$0xf] %v330
                %v332 = vld [vmem:[%s326 + $0x8] sm:$0xf]
                %333 = vst [vmem:[%s327 + $0x8] sm:$0xf] %v332
                %v334 = vld [vmem:[%s326 + $0xc] sm:$0xf]
                %335 = vst [vmem:[%s327 + $0xc] sm:$0xf] %v334
                %s336 = sadd.s32 1, %s325
                %p337 = scmp.ge.s32.totalorder %s336, %s318
                %s338 = scalar_select %p337, 0, %s336
                %s339 = smul.u32 %s338, 16
                %s340 = smul.u32 %s338, 16
                %s341 = scalar_lea.vmem %s298, %s339 [#allocation2]
                %s342 = scalar_lea.vmem %s309, %s340
              $region53: #{upsample_net_forward.1} parent=47 // loop_footer
                %s322 = sadd.s32 %s320, 1
              $region54: #{upsample_net_forward.1} parent=47 // loop_footer_branch
                %319 = sbr.rel target = $region50
              $region55: #{upsample_net_forward.1} parent=47 // loop_exit
                _
              %s343 = sshrl.u32 %s305, 2
              %s344 = sand.u32 %s305, 3
              %s345 = smul.u32 %s343, 4
              %s346 = smul.u32 4, %s345
              %s347 = scalar_lea.vmem %s298, %s346 [#allocation2]
              %s348 = smul.u32 4, %s345
              %s349 = scalar_lea.vmem %s309, %s348
              // While loop
              $region56: #{upsample_net_forward.1} parent=47 // loop_pre_header
                _
              $region57: #{upsample_net_forward.1} parent=47 // loop_header
                %s351 = sphi 0, %s353
                %p352 = scmp.ge.s32.totalorder %s351, %s344
                %s356 = sphi 0, %s363
                %s357 = sphi %s347, %s366
                %s358 = sphi %s349, %s367
              $region58: #{upsample_net_forward.1} parent=47 // loop_header_branch
                %355 = sbr.rel (%p352) target = $region62
              $region59: #{upsample_net_forward.1} parent=47 // loop_body
                %v359 = vld [vmem:[%s357] sm:$0xf]
                %360 = vst [vmem:[%s358] sm:$0xf] %v359
                %s361 = sadd.s32 1, %s356
                %p362 = scmp.ge.s32.totalorder %s361, %s344
                %s363 = scalar_select %p362, 0, %s361
                %s364 = smul.u32 %s363, 4
                %s365 = smul.u32 %s363, 4
                %s366 = scalar_lea.vmem %s347, %s364 [#allocation2]
                %s367 = scalar_lea.vmem %s349, %s365
              $region60: #{upsample_net_forward.1} parent=47 // loop_footer
                %s353 = sadd.s32 %s351, 1
              $region61: #{upsample_net_forward.1} parent=47 // loop_footer_branch
                %350 = sbr.rel target = $region57
              $region62: #{upsample_net_forward.1} parent=47 // loop_exit
                _
            $region48: #{upsample_net_forward.1} parent=39 // pred_fallthru
              _
          $region40: #{upsample_net_forward.1} parent=35 // pred_fallthru
            _
          %421 = vnop
        $region36: #{upsample_net_forward.1} parent=31 // pred_fallthru
          _
      $region32: #{upsample_net_forward.1} parent=5 // pred_fallthru
        _
      %p422 = scmp.le.s32.totalorder 2, %s9
      // Predicated region
      $region81: #{upsample_net_forward.1} parent=5 // pred_check
        %p423 = pneg %p422
      $region82: #{upsample_net_forward.1} parent=5 // pred_check_branch
        %425 = sbr.rel (%p423) target = $region84
      $region83: #{upsample_net_forward.1} parent=5 // pred_region
        %s426 = ssub.s32 %s9, 2
        // Predicated region
        $region85: #{upsample_net_forward.1} parent=83 // pred_check
          %p427 = pneg %p106
        $region86: #{upsample_net_forward.1} parent=83 // pred_check_branch
          %429 = sbr.rel (%p427) target = $region88
        $region87: #{upsample_net_forward.1} parent=83 // pred_region
          %s430 = sand.u32 %s91, 1
          %s431 = sand.u32 %s91, 1
          %s432 = smul.addr %s431, 16
          %s433 = scalar_lea.vmem [#allocation2], %s432
        $region88: #{upsample_net_forward.1} parent=83 // pred_fallthru
          _
      $region84: #{upsample_net_forward.1} parent=5 // pred_fallthru
        _
    $region6: #{upsample_net_forward.1} parent=1 // loop_footer
      %s13 = sadd.s32 1, %s9
    $region7: #{upsample_net_forward.1} parent=1 // loop_footer_branch
      %8 = sbr.rel target = $region3
    $region8: #{upsample_net_forward.1} parent=1 // loop_exit
      _

</llo_original>
